<compile_context>
chip_gen: v7x
topology: tpu7x:2x2x1
jax: 0.10.0
libtpu: 0.0.40
codegen_flags: <defaults>
</compile_context>

<pallas_src>
import functools

import jax
import jax.numpy as jnp
from jax import lax
from jax.experimental import pallas as pl
from jax.experimental.pallas import tpu as pltpu


def _block_kernel(x_ref, w_ref, b_ref, p_ref, gamma_ref, beta_ref, o_ref, *, L, eps):
    """Fused Conv1d(k=3, pad=1) + GroupNorm + Mish for one batch element.

    x_ref:     (1, C_in, L+2)   zero-padded input slab for this batch element
    w_ref:     (3, C_out, C_in) conv weight, tap-major so w_ref[k] is a clean 2-D load
    b_ref:     (C_out, 1)       conv bias
    p_ref:     (C_out, C_out)   block-diagonal group-averaging matrix (1/(cpg*L) per group)
    gamma_ref: (C_out, 1)       GroupNorm scale
    beta_ref:  (C_out, 1)       GroupNorm shift
    o_ref:     (1, C_out, L)    output
    """
    x = x_ref[0]                                                  # (C_in, L+2)

    # --- Conv1d: y[co, l] = sum_k W[:, :, k] @ x_pad[:, l+k] + b -------------
    acc = jnp.dot(w_ref[0], x[:, 0:L], preferred_element_type=jnp.float32)
    acc = acc + jnp.dot(w_ref[1], x[:, 1:L + 1], preferred_element_type=jnp.float32)
    acc = acc + jnp.dot(w_ref[2], x[:, 2:L + 2], preferred_element_type=jnp.float32)
    acc = acc + b_ref[...]                                        # (C_out, L)

    # --- GroupNorm (biased variance, matching torch) --------------------------
    ch_sum = jnp.sum(acc, axis=-1, keepdims=True)                 # (C_out, 1)
    ch_sqsum = jnp.sum(acc * acc, axis=-1, keepdims=True)         # (C_out, 1)
    mean_c = jnp.dot(p_ref[...], ch_sum, preferred_element_type=jnp.float32)
    msq_c = jnp.dot(p_ref[...], ch_sqsum, preferred_element_type=jnp.float32)
    var_c = msq_c - mean_c * mean_c                               # per-channel == per-group
    inv_std = lax.rsqrt(var_c + eps)
    y = (acc - mean_c) * inv_std * gamma_ref[...] + beta_ref[...]

    # --- Mish: y * tanh(softplus(y)), numerically stable softplus -------------
    sp = jnp.maximum(y, 0.0) + jnp.log(1.0 + jnp.exp(-jnp.abs(y)))
    o_ref[0, :, :] = (y * jnp.tanh(sp)).astype(o_ref.dtype)


def block_forward(x, conv_w, conv_b, gn_w, gn_b, *, groups=8, eps=1e-5):
    """x: (B, C_in, L) f32; conv_w: (C_out, C_in, 3); conv_b/gn_w/gn_b: (C_out,)."""
    B, C_in, L = x.shape
    C_out = conv_w.shape[0]
    assert C_out % groups == 0, "dim_out must be divisible by groups"
    cpg = C_out // groups

    # Layout plumbing done once in the wrapper (fused by XLA, not per-grid-step):
    x_pad = jnp.pad(x.astype(jnp.float32), ((0, 0), (0, 0), (1, 1)))   # (B, C_in, L+2)
    w_t = jnp.transpose(conv_w.astype(jnp.float32), (2, 0, 1))         # (3, C_out, C_in)
    b2 = conv_b.astype(jnp.float32).reshape(C_out, 1)
    gamma2 = gn_w.astype(jnp.float32).reshape(C_out, 1)
    beta2 = gn_b.astype(jnp.float32).reshape(C_out, 1)
    group_id = jnp.arange(C_out) // cpg
    P = (group_id[:, None] == group_id[None, :]).astype(jnp.float32) / float(cpg * L)

    flops = B * (2 * C_out * C_in * 3 * L + 12 * C_out * L + 4 * C_out * C_out)
    transcendentals = B * C_out * L * 3                       # exp, log, tanh per element
    bytes_accessed = 4 * (x_pad.size + w_t.size + b2.size + P.size
                          + gamma2.size + beta2.size + B * C_out * L)

    kernel = functools.partial(_block_kernel, L=L, eps=eps)
    return pl.pallas_call(
        kernel,
        out_shape=jax.ShapeDtypeStruct((B, C_out, L), jnp.float32),
        grid=(B,),
        in_specs=[
            pl.BlockSpec((1, C_in, L + 2), lambda b: (b, 0, 0)),
            pl.BlockSpec((3, C_out, C_in), lambda b: (0, 0, 0)),
            pl.BlockSpec((C_out, 1), lambda b: (0, 0)),
            pl.BlockSpec((C_out, C_out), lambda b: (0, 0)),
            pl.BlockSpec((C_out, 1), lambda b: (0, 0)),
            pl.BlockSpec((C_out, 1), lambda b: (0, 0)),
        ],
        out_specs=pl.BlockSpec((1, C_out, L), lambda b: (b, 0, 0)),
        compiler_params=pltpu.CompilerParams(dimension_semantics=("parallel",)),
        cost_estimate=pl.CostEstimate(flops=flops,
                                      transcendentals=transcendentals,
                                      bytes_accessed=bytes_accessed),
    )(x_pad, w_t, b2, P, gamma2, beta2)


if __name__ == "__main__":
    key = jax.random.PRNGKey(0)
    k_x, k_w, k_b, k_g, k_be = jax.random.split(key, 5)

    B, C_in, C_out, L, groups = 2, 8, 16, 16, 8
    eps = 1e-5

    x = jax.random.normal(k_x, (B, C_in, L), dtype=jnp.float32)
    conv_w = jax.random.normal(k_w, (C_out, C_in, 3), dtype=jnp.float32) * 0.2
    conv_b = jax.random.normal(k_b, (C_out,), dtype=jnp.float32) * 0.1
    gn_w = 1.0 + 0.1 * jax.random.normal(k_g, (C_out,), dtype=jnp.float32)
    gn_b = 0.1 * jax.random.normal(k_be, (C_out,), dtype=jnp.float32)

    out = block_forward(x, conv_w, conv_b, gn_w, gn_b, groups=groups, eps=eps)
    out = jax.block_until_ready(out)

    # Pure-JAX reference: Conv1d -> GroupNorm -> Mish.
    y = lax.conv_general_dilated(x, conv_w, window_strides=(1,), padding=((1, 1),),
                                 dimension_numbers=("NCH", "OIH", "NCH"))
    y = y + conv_b[None, :, None]
    cpg = C_out // groups
    yr = y.reshape(B, groups, cpg, L)
    mean = yr.mean(axis=(2, 3), keepdims=True)
    var = yr.var(axis=(2, 3), keepdims=True)              # biased, like torch GroupNorm
    yn = (yr - mean) / jnp.sqrt(var + eps)
    yn = yn.reshape(B, C_out, L) * gn_w[None, :, None] + gn_b[None, :, None]
    ref = yn * jnp.tanh(jax.nn.softplus(yn))

    assert out.shape == (B, C_out, L), out.shape
    max_err = float(jnp.max(jnp.abs(out - ref)))
    assert jnp.allclose(out, ref, atol=1e-4, rtol=1e-4), f"mismatch vs reference: {max_err}"

    print("KERNEL_OK")
</pallas_src>

<mosaic_0001>
module attributes {stable_mosaic.version = 11 : i64} {
  func.func @_block_kernel(%arg0: i32, %arg1: memref<1x8x18xf32, #tpu.memory_space<vmem>>, %arg2: memref<3x16x8xf32, #tpu.memory_space<vmem>>, %arg3: memref<16x1xf32, #tpu.memory_space<vmem>>, %arg4: memref<16x16xf32, #tpu.memory_space<vmem>>, %arg5: memref<16x1xf32, #tpu.memory_space<vmem>>, %arg6: memref<16x1xf32, #tpu.memory_space<vmem>>, %arg7: memref<1x16x16xf32, #tpu.memory_space<vmem>>) attributes {dimension_semantics = [#tpu.dimension_semantics<parallel>], iteration_bounds = array<i64: 2>, scalar_prefetch = 0 : i64, scratch_operands = 0 : i64, tpu.core_type = #tpu.core_type<tc>, window_params = [{transform_indices = @transform_0, window_bounds = array<i64: 1, 8, 18>}, {pipeline_mode = #tpu.pipeline_mode<synchronous>, transform_indices = @transform_1, window_bounds = array<i64: 3, 16, 8>}, {pipeline_mode = #tpu.pipeline_mode<synchronous>, transform_indices = @transform_2, window_bounds = array<i64: 16, 1>}, {pipeline_mode = #tpu.pipeline_mode<synchronous>, transform_indices = @transform_3, window_bounds = array<i64: 16, 16>}, {pipeline_mode = #tpu.pipeline_mode<synchronous>, transform_indices = @transform_4, window_bounds = array<i64: 16, 1>}, {pipeline_mode = #tpu.pipeline_mode<synchronous>, transform_indices = @transform_5, window_bounds = array<i64: 16, 1>}, {transform_indices = @transform_6, window_bounds = array<i64: 1, 16, 16>}]} {
    %c0 = arith.constant 0 : index
    %c0_0 = arith.constant 0 : index
    %c0_1 = arith.constant 0 : index
    %0 = vector.load %arg1[%c0, %c0_0, %c0_1] : memref<1x8x18xf32, #tpu.memory_space<vmem>>, vector<1x8x18xf32>
    %1 = vector.shape_cast %0 : vector<1x8x18xf32> to vector<8x18xf32>
    %c0_2 = arith.constant 0 : index
    %c0_3 = arith.constant 0 : index
    %c0_4 = arith.constant 0 : index
    %2 = vector.load %arg2[%c0_2, %c0_3, %c0_4] : memref<3x16x8xf32, #tpu.memory_space<vmem>>, vector<1x16x8xf32>
    %3 = vector.shape_cast %2 : vector<1x16x8xf32> to vector<16x8xf32>
    %4 = vector.extract_strided_slice %1 {offsets = [0, 0], sizes = [8, 16], strides = [1, 1]} : vector<8x18xf32> to vector<8x16xf32>
    %cst = arith.constant dense<0.000000e+00> : vector<16x16xf32>
    %5 = tpu.matmul %3, %4, %cst {dimension_numbers = #tpu.dot_dimension_numbers<[1], [0], [0], [1], [0, 0, 1, 1], [], []>} : vector<16x8xf32>, vector<8x16xf32>, vector<16x16xf32> -> vector<16x16xf32>
    %c1 = arith.constant 1 : index
    %c0_5 = arith.constant 0 : index
    %c0_6 = arith.constant 0 : index
    %6 = vector.load %arg2[%c1, %c0_5, %c0_6] : memref<3x16x8xf32, #tpu.memory_space<vmem>>, vector<1x16x8xf32>
    %7 = vector.shape_cast %6 : vector<1x16x8xf32> to vector<16x8xf32>
    %8 = vector.extract_strided_slice %1 {offsets = [0, 1], sizes = [8, 16], strides = [1, 1]} : vector<8x18xf32> to vector<8x16xf32>
    %cst_7 = arith.constant dense<0.000000e+00> : vector<16x16xf32>
    %9 = tpu.matmul %7, %8, %cst_7 {dimension_numbers = #tpu.dot_dimension_numbers<[1], [0], [0], [1], [0, 0, 1, 1], [], []>} : vector<16x8xf32>, vector<8x16xf32>, vector<16x16xf32> -> vector<16x16xf32>
    %10 = arith.addf %5, %9 : vector<16x16xf32>
    %c2 = arith.constant 2 : index
    %c0_8 = arith.constant 0 : index
    %c0_9 = arith.constant 0 : index
    %11 = vector.load %arg2[%c2, %c0_8, %c0_9] : memref<3x16x8xf32, #tpu.memory_space<vmem>>, vector<1x16x8xf32>
    %12 = vector.shape_cast %11 : vector<1x16x8xf32> to vector<16x8xf32>
    %13 = vector.extract_strided_slice %1 {offsets = [0, 2], sizes = [8, 16], strides = [1, 1]} : vector<8x18xf32> to vector<8x16xf32>
    %cst_10 = arith.constant dense<0.000000e+00> : vector<16x16xf32>
    %14 = tpu.matmul %12, %13, %cst_10 {dimension_numbers = #tpu.dot_dimension_numbers<[1], [0], [0], [1], [0, 0, 1, 1], [], []>} : vector<16x8xf32>, vector<8x16xf32>, vector<16x16xf32> -> vector<16x16xf32>
    %15 = arith.addf %10, %14 : vector<16x16xf32>
    %c0_11 = arith.constant 0 : index
    %c0_12 = arith.constant 0 : index
    %16 = vector.load %arg3[%c0_11, %c0_12] : memref<16x1xf32, #tpu.memory_space<vmem>>, vector<16x1xf32>
    %17 = vector.broadcast %16 : vector<16x1xf32> to vector<16x16xf32>
    %18 = arith.addf %15, %17 : vector<16x16xf32>
    %cst_13 = arith.constant dense<0.000000e+00> : vector<16xf32>
    %19 = vector.multi_reduction <add>, %18, %cst_13 [1] : vector<16x16xf32> to vector<16xf32>
    %20 = vector.shape_cast %19 : vector<16xf32> to vector<16x1xf32>
    %21 = arith.mulf %18, %18 : vector<16x16xf32>
    %cst_14 = arith.constant dense<0.000000e+00> : vector<16xf32>
    %22 = vector.multi_reduction <add>, %21, %cst_14 [1] : vector<16x16xf32> to vector<16xf32>
    %23 = vector.shape_cast %22 : vector<16xf32> to vector<16x1xf32>
    %c0_15 = arith.constant 0 : index
    %c0_16 = arith.constant 0 : index
    %24 = vector.load %arg4[%c0_15, %c0_16] : memref<16x16xf32, #tpu.memory_space<vmem>>, vector<16x16xf32>
    %cst_17 = arith.constant dense<0.000000e+00> : vector<16x1xf32>
    %25 = tpu.matmul %24, %20, %cst_17 {dimension_numbers = #tpu.dot_dimension_numbers<[1], [0], [0], [1], [0, 0, 1, 1], [], []>} : vector<16x16xf32>, vector<16x1xf32>, vector<16x1xf32> -> vector<16x1xf32>
    %c0_18 = arith.constant 0 : index
    %c0_19 = arith.constant 0 : index
    %26 = vector.load %arg4[%c0_18, %c0_19] : memref<16x16xf32, #tpu.memory_space<vmem>>, vector<16x16xf32>
    %cst_20 = arith.constant dense<0.000000e+00> : vector<16x1xf32>
    %27 = tpu.matmul %26, %23, %cst_20 {dimension_numbers = #tpu.dot_dimension_numbers<[1], [0], [0], [1], [0, 0, 1, 1], [], []>} : vector<16x16xf32>, vector<16x1xf32>, vector<16x1xf32> -> vector<16x1xf32>
    %28 = arith.mulf %25, %25 : vector<16x1xf32>
    %29 = arith.subf %27, %28 : vector<16x1xf32>
    %cst_21 = arith.constant 9.99999974E-6 : f32
    %30 = vector.broadcast %cst_21 : f32 to vector<16x1xf32>
    %31 = arith.addf %29, %30 : vector<16x1xf32>
    %32 = math.rsqrt %31 : vector<16x1xf32>
    %33 = vector.broadcast %25 : vector<16x1xf32> to vector<16x16xf32>
    %34 = arith.subf %18, %33 : vector<16x16xf32>
    %35 = vector.broadcast %32 : vector<16x1xf32> to vector<16x16xf32>
    %36 = arith.mulf %34, %35 : vector<16x16xf32>
    %c0_22 = arith.constant 0 : index
    %c0_23 = arith.constant 0 : index
    %37 = vector.load %arg5[%c0_22, %c0_23] : memref<16x1xf32, #tpu.memory_space<vmem>>, vector<16x1xf32>
    %38 = vector.broadcast %37 : vector<16x1xf32> to vector<16x16xf32>
    %39 = arith.mulf %36, %38 : vector<16x16xf32>
    %c0_24 = arith.constant 0 : index
    %c0_25 = arith.constant 0 : index
    %40 = vector.load %arg6[%c0_24, %c0_25] : memref<16x1xf32, #tpu.memory_space<vmem>>, vector<16x1xf32>
    %41 = vector.broadcast %40 : vector<16x1xf32> to vector<16x16xf32>
    %42 = arith.addf %39, %41 : vector<16x16xf32>
    %cst_26 = arith.constant 0.000000e+00 : f32
    %43 = vector.broadcast %cst_26 : f32 to vector<16x16xf32>
    %44 = arith.maximumf %42, %43 : vector<16x16xf32>
    %45 = math.absf %42 : vector<16x16xf32>
    %cst_27 = arith.constant 0.000000e+00 : f32
    %46 = vector.broadcast %cst_27 : f32 to vector<16x16xf32>
    %47 = arith.subf %46, %45 : vector<16x16xf32>
    %48 = math.exp %47 : vector<16x16xf32>
    %cst_28 = arith.constant 1.000000e+00 : f32
    %49 = vector.broadcast %cst_28 : f32 to vector<16x16xf32>
    %50 = arith.addf %49, %48 : vector<16x16xf32>
    %51 = math.log %50 : vector<16x16xf32>
    %52 = arith.addf %44, %51 : vector<16x16xf32>
    %53 = math.tanh %52 : vector<16x16xf32>
    %54 = arith.mulf %42, %53 : vector<16x16xf32>
    %c0_29 = arith.constant 0 : index
    %c0_30 = arith.constant 0 : index
    %c0_31 = arith.constant 0 : index
    %55 = vector.load %arg7[%c0_29, %c0_30, %c0_31] : memref<1x16x16xf32, #tpu.memory_space<vmem>>, vector<1x16x16xf32>
    %56 = vector.shape_cast %55 : vector<1x16x16xf32> to vector<16x16xf32>
    %57 = vector.shape_cast %54 : vector<16x16xf32> to vector<1x16x16xf32>
    tpu.vector_store %arg7[%c0_29, %c0_30, %c0_31], %57 {strides = array<i32>} : memref<1x16x16xf32, #tpu.memory_space<vmem>>, vector<1x16x16xf32>,
    return
  }
  func.func @transform_0(%arg0: i32) -> (i32, i32, i32) {
    %c0_i32 = arith.constant 0 : i32
    %c0_i32_0 = arith.constant 0 : i32
    %c0_i32_1 = arith.constant 0 : i32
    return %arg0, %c0_i32, %c0_i32_0 : i32, i32, i32
  }
  func.func @transform_1(%arg0: i32) -> (i32, i32, i32) {
    %c0_i32 = arith.constant 0 : i32
    %c0_i32_0 = arith.constant 0 : i32
    %c0_i32_1 = arith.constant 0 : i32
    %c0_i32_2 = arith.constant 0 : i32
    return %c0_i32, %c0_i32_0, %c0_i32_1 : i32, i32, i32
  }
  func.func @transform_2(%arg0: i32) -> (i32, i32) {
    %c0_i32 = arith.constant 0 : i32
    %c0_i32_0 = arith.constant 0 : i32
    %c0_i32_1 = arith.constant 0 : i32
    return %c0_i32, %c0_i32_0 : i32, i32
  }
  func.func @transform_3(%arg0: i32) -> (i32, i32) {
    %c0_i32 = arith.constant 0 : i32
    %c0_i32_0 = arith.constant 0 : i32
    %c0_i32_1 = arith.constant 0 : i32
    return %c0_i32, %c0_i32_0 : i32, i32
  }
  func.func @transform_4(%arg0: i32) -> (i32, i32) {
    %c0_i32 = arith.constant 0 : i32
    %c0_i32_0 = arith.constant 0 : i32
    %c0_i32_1 = arith.constant 0 : i32
    return %c0_i32, %c0_i32_0 : i32, i32
  }
  func.func @transform_5(%arg0: i32) -> (i32, i32) {
    %c0_i32 = arith.constant 0 : i32
    %c0_i32_0 = arith.constant 0 : i32
    %c0_i32_1 = arith.constant 0 : i32
    return %c0_i32, %c0_i32_0 : i32, i32
  }
  func.func @transform_6(%arg0: i32) -> (i32, i32, i32) {
    %c0_i32 = arith.constant 0 : i32
    %c0_i32_0 = arith.constant 0 : i32
    %c0_i32_1 = arith.constant 0 : i32
    return %arg0, %c0_i32, %c0_i32_0 : i32, i32, i32
  }
}

</mosaic_0001>

<llo_original>
// kernel: tpu_custom_call.1
$region0: #{tpu_custom_call.1}
  #allocation0 [shape = 'u32[]', space=smem, size = 0x4, offset = 0x4, fixed_abs, tag = 'smem constant byte address 0x4 - core index']
  #allocation1 [shape = 'u32[144,128]{1,0:T(1,128)}', space=vmem, size = 0x12000, scoped, tag = 'internal scratch']
  %s0 = inlined_call_operand.vmem [shape: f32[2,8,18], index: 0, kind: input, shape index: {}]
  %s1 = inlined_call_operand.vmem [shape: f32[3,16,8], index: 1, kind: input, shape index: {}]
  %s2 = inlined_call_operand.vmem [shape: f32[16,1], index: 2, kind: input, shape index: {}]
  %s3 = inlined_call_operand.vmem [shape: f32[16,16], index: 3, kind: input, shape index: {}]
  %s4 = inlined_call_operand.vmem [shape: f32[16,1], index: 4, kind: input, shape index: {}]
  %s5 = inlined_call_operand.vmem [shape: f32[16,1], index: 5, kind: input, shape index: {}]
  %s6 = inlined_call_operand.hbm [shape: f32[2,16,16], index: 6, kind: output, shape index: {}]
  %s7 = sld [smem:[#allocation0]]
  $region57: #{tpu_custom_call.1} parent=0
    _
  %s9 = ssub.s32 1, %s7
  %s10 = scalar_select 0, %s9, %s7
  $region1: #{tpu_custom_call.1} parent=0
    #allocation2 [shape = 'u8[16384]{0}', space=vmem, size = 0x4000, scoped, tag = 'output window, operand 0']
    #allocation3 [shape = 's32[2]{0}', space=sflag, size = 0x8, scoped, tag = 'scoped memory for tpu_custom_call.1']
    %11 = vsyncpa [#allocation3], 0
    %s12 = scalar_lea.sflag [#allocation3], 1
    %13 = vsyncpa %s12, 0
    loop: start=0, step=1, limit=4
    $region2: #{tpu_custom_call.1} parent=1 // loop_pre_header
      _
    $region3: #{tpu_custom_call.1} parent=1 // loop_header
      %s15 = sphi 0, %s19
      %p16 = scmp.ge.s32.totalorder %s15, 4
      %s25 = sphi 0, %s27
      %s28 = sphi 0, %s25
      %s29 = sphi 0, %s28
      %s45 = sphi 0, %s29
      %s49 = sphi 0, %s49
      %s51 = sphi 0, %s49
      %s52 = sphi 0, %s51
      %s66 = sphi 0, %s52
      %s70 = sphi 0, %s70
      %s72 = sphi 0, %s70
      %s73 = sphi 0, %s72
      %s87 = sphi 0, %s73
      %s91 = sphi 0, %s91
      %s93 = sphi 0, %s91
      %s94 = sphi 0, %s93
      %s108 = sphi 0, %s94
      %s112 = sphi 0, %s112
      %s114 = sphi 0, %s112
      %s115 = sphi 0, %s114
      %s129 = sphi 0, %s115
      %s133 = sphi 0, %s133
      %s135 = sphi 0, %s133
      %s136 = sphi 0, %s135
      %s150 = sphi 0, %s136
      %s156 = sphi 0, %s158
      %s159 = sphi 0, %s156
      %s160 = sphi 0, %s159
      %s176 = sphi 0, %s160
    $region4: #{tpu_custom_call.1} parent=1 // loop_header_branch
      %18 = sbr.rel (%p16) target = $region8
    $region5: #{tpu_custom_call.1} parent=1 // loop_body
      %s20 = ssub.s32 %s15, 1
      %s21 = ssub.s32 %s15, 2
      %s22 = sadd.s32 %s15, 1
      %s23 = ssub.s32 %s15, %s22
      %p24 = scmp.eq.s32.totalorder %s23, 0
      %s26 = sadd.s32 %s25, 1
      %s27 = scalar_select %p24, %s25, %s26
      %p30 = pneg %p24
      %p31 = scmp.eq.s32.totalorder %s15, 1
      %p32 = por %p30, %p31
      %p33 = scmp.ne.s32.totalorder %s25, %s28
      %p34 = scmp.eq.s32.totalorder %s15, 0
      %p35 = por %p33, %p34
      %p36 = scmp.ne.s32.totalorder %s25, %s28
      %p37 = scmp.eq.s32.totalorder %s20, 1
      %p38 = por %p36, %p37
      %p39 = scmp.ne.s32.totalorder %s28, %s29
      %p40 = scmp.eq.s32.totalorder %s20, 0
      %p41 = por %p39, %p40
      %p42 = scmp.ne.s32.totalorder %s28, %s29
      %p43 = scmp.eq.s32.totalorder %s21, 1
      %p44 = por %p42, %p43
      %p46 = scmp.ne.s32.totalorder %s29, %s45
      %p47 = scmp.eq.s32.totalorder %s21, 0
      %p48 = por %p46, %p47
      %s50 = sadd.s32 %s49, 1
      %p53 = scmp.eq.s32.totalorder %s15, 1
      %p54 = scmp.ne.s32.totalorder %s49, %s51
      %p55 = scmp.eq.s32.totalorder %s15, 0
      %p56 = por %p54, %p55
      %p57 = scmp.ne.s32.totalorder %s49, %s51
      %p58 = scmp.eq.s32.totalorder %s20, 1
      %p59 = por %p57, %p58
      %p60 = scmp.ne.s32.totalorder %s51, %s52
      %p61 = scmp.eq.s32.totalorder %s20, 0
      %p62 = por %p60, %p61
      %p63 = scmp.ne.s32.totalorder %s51, %s52
      %p64 = scmp.eq.s32.totalorder %s21, 1
      %p65 = por %p63, %p64
      %p67 = scmp.ne.s32.totalorder %s52, %s66
      %p68 = scmp.eq.s32.totalorder %s21, 0
      %p69 = por %p67, %p68
      %s71 = sadd.s32 %s70, 1
      %p74 = scmp.eq.s32.totalorder %s15, 1
      %p75 = scmp.ne.s32.totalorder %s70, %s72
      %p76 = scmp.eq.s32.totalorder %s15, 0
      %p77 = por %p75, %p76
      %p78 = scmp.ne.s32.totalorder %s70, %s72
      %p79 = scmp.eq.s32.totalorder %s20, 1
      %p80 = por %p78, %p79
      %p81 = scmp.ne.s32.totalorder %s72, %s73
      %p82 = scmp.eq.s32.totalorder %s20, 0
      %p83 = por %p81, %p82
      %p84 = scmp.ne.s32.totalorder %s72, %s73
      %p85 = scmp.eq.s32.totalorder %s21, 1
      %p86 = por %p84, %p85
      %p88 = scmp.ne.s32.totalorder %s73, %s87
      %p89 = scmp.eq.s32.totalorder %s21, 0
      %p90 = por %p88, %p89
      %s92 = sadd.s32 %s91, 1
      %p95 = scmp.eq.s32.totalorder %s15, 1
      %p96 = scmp.ne.s32.totalorder %s91, %s93
      %p97 = scmp.eq.s32.totalorder %s15, 0
      %p98 = por %p96, %p97
      %p99 = scmp.ne.s32.totalorder %s91, %s93
      %p100 = scmp.eq.s32.totalorder %s20, 1
      %p101 = por %p99, %p100
      %p102 = scmp.ne.s32.totalorder %s93, %s94
      %p103 = scmp.eq.s32.totalorder %s20, 0
      %p104 = por %p102, %p103
      %p105 = scmp.ne.s32.totalorder %s93, %s94
      %p106 = scmp.eq.s32.totalorder %s21, 1
      %p107 = por %p105, %p106
      %p109 = scmp.ne.s32.totalorder %s94, %s108
      %p110 = scmp.eq.s32.totalorder %s21, 0
      %p111 = por %p109, %p110
      %s113 = sadd.s32 %s112, 1
      %p116 = scmp.eq.s32.totalorder %s15, 1
      %p117 = scmp.ne.s32.totalorder %s112, %s114
      %p118 = scmp.eq.s32.totalorder %s15, 0
      %p119 = por %p117, %p118
      %p120 = scmp.ne.s32.totalorder %s112, %s114
      %p121 = scmp.eq.s32.totalorder %s20, 1
      %p122 = por %p120, %p121
      %p123 = scmp.ne.s32.totalorder %s114, %s115
      %p124 = scmp.eq.s32.totalorder %s20, 0
      %p125 = por %p123, %p124
      %p126 = scmp.ne.s32.totalorder %s114, %s115
      %p127 = scmp.eq.s32.totalorder %s21, 1
      %p128 = por %p126, %p127
      %p130 = scmp.ne.s32.totalorder %s115, %s129
      %p131 = scmp.eq.s32.totalorder %s21, 0
      %p132 = por %p130, %p131
      %s134 = sadd.s32 %s133, 1
      %p137 = scmp.eq.s32.totalorder %s15, 1
      %p138 = scmp.ne.s32.totalorder %s133, %s135
      %p139 = scmp.eq.s32.totalorder %s15, 0
      %p140 = por %p138, %p139
      %p141 = scmp.ne.s32.totalorder %s133, %s135
      %p142 = scmp.eq.s32.totalorder %s20, 1
      %p143 = por %p141, %p142
      %p144 = scmp.ne.s32.totalorder %s135, %s136
      %p145 = scmp.eq.s32.totalorder %s20, 0
      %p146 = por %p144, %p145
      %p147 = scmp.ne.s32.totalorder %s135, %s136
      %p148 = scmp.eq.s32.totalorder %s21, 1
      %p149 = por %p147, %p148
      %p151 = scmp.ne.s32.totalorder %s136, %s150
      %p152 = scmp.eq.s32.totalorder %s21, 0
      %p153 = por %p151, %p152
      %s154 = ssub.s32 %s15, %s22
      %p155 = scmp.eq.s32.totalorder %s154, 0
      %s157 = sadd.s32 %s156, 1
      %s158 = scalar_select %p155, %s156, %s157
      %p161 = pneg %p155
      %p162 = scmp.eq.s32.totalorder %s15, 1
      %p163 = por %p161, %p162
      %p164 = scmp.ne.s32.totalorder %s156, %s159
      %p165 = scmp.eq.s32.totalorder %s15, 0
      %p166 = por %p164, %p165
      %p167 = scmp.ne.s32.totalorder %s156, %s159
      %p168 = scmp.eq.s32.totalorder %s20, 1
      %p169 = por %p167, %p168
      %p170 = scmp.ne.s32.totalorder %s159, %s160
      %p171 = scmp.eq.s32.totalorder %s20, 0
      %p172 = por %p170, %p171
      %p173 = scmp.ne.s32.totalorder %s159, %s160
      %p174 = scmp.eq.s32.totalorder %s21, 1
      %p175 = por %p173, %p174
      %p177 = scmp.ne.s32.totalorder %s160, %s176
      %p178 = scmp.eq.s32.totalorder %s21, 0
      %p179 = por %p177, %p178
      %p180 = scmp.le.s32.totalorder 1, %s15
      %p181 = scmp.lt.s32.totalorder %s15, 3
      %p182 = pnand %p180, %p181
      %p183 = pneg %p182
      // Predicated region
      $region9: #{tpu_custom_call.1} parent=5 // pred_check
        _
      $region10: #{tpu_custom_call.1} parent=5 // pred_check_branch
        %185 = sbr.rel (%p182) target = $region12
      $region11: #{tpu_custom_call.1} parent=5 // pred_region
        %s186 = ssub.s32 %s15, 1
        // Predicated region
        $region13: #{tpu_custom_call.1} parent=11 // pred_check
          %p187 = pneg %p62
        $region14: #{tpu_custom_call.1} parent=11 // pred_check_branch
          %189 = sbr.rel (%p187) target = $region16
        $region15: #{tpu_custom_call.1} parent=11 // pred_region
          _
        $region16: #{tpu_custom_call.1} parent=11 // pred_fallthru
          _
        // Predicated region
        $region17: #{tpu_custom_call.1} parent=11 // pred_check
          %p190 = pneg %p83
        $region18: #{tpu_custom_call.1} parent=11 // pred_check_branch
          %192 = sbr.rel (%p190) target = $region20
        $region19: #{tpu_custom_call.1} parent=11 // pred_region
          _
        $region20: #{tpu_custom_call.1} parent=11 // pred_fallthru
          _
        // Predicated region
        $region21: #{tpu_custom_call.1} parent=11 // pred_check
          %p193 = pneg %p104
        $region22: #{tpu_custom_call.1} parent=11 // pred_check_branch
          %195 = sbr.rel (%p193) target = $region24
        $region23: #{tpu_custom_call.1} parent=11 // pred_region
          _
        $region24: #{tpu_custom_call.1} parent=11 // pred_fallthru
          _
        // Predicated region
        $region25: #{tpu_custom_call.1} parent=11 // pred_check
          %p196 = pneg %p125
        $region26: #{tpu_custom_call.1} parent=11 // pred_check_branch
          %198 = sbr.rel (%p196) target = $region28
        $region27: #{tpu_custom_call.1} parent=11 // pred_region
          _
        $region28: #{tpu_custom_call.1} parent=11 // pred_fallthru
          _
        // Predicated region
        $region29: #{tpu_custom_call.1} parent=11 // pred_check
          %p199 = pneg %p146
        $region30: #{tpu_custom_call.1} parent=11 // pred_check_branch
          %201 = sbr.rel (%p199) target = $region32
        $region31: #{tpu_custom_call.1} parent=11 // pred_region
          _
        $region32: #{tpu_custom_call.1} parent=11 // pred_fallthru
          _
      $region12: #{tpu_custom_call.1} parent=5 // pred_fallthru
        _
      %p202 = scmp.lt.s32.totalorder %s15, 2
      // Predicated region
      $region33: #{tpu_custom_call.1} parent=5 // pred_check
        %p203 = pneg %p202
      $region34: #{tpu_custom_call.1} parent=5 // pred_check_branch
        %205 = sbr.rel (%p203) target = $region36
      $region35: #{tpu_custom_call.1} parent=5 // pred_region
        // Predicated region
        $region37: #{tpu_custom_call.1} parent=35 // pred_check
          %p206 = pneg %p35
        $region38: #{tpu_custom_call.1} parent=35 // pred_check_branch
          %208 = sbr.rel (%p206) target = $region40
        $region39: #{tpu_custom_call.1} parent=35 // pred_region
          %p209 = scmp.lt.s32.totalorder %s15, 1
          %s210 = scalar_select %p209, %s15, 1
          %s211 = smul.addr %s210, 8
          %s212 = scalar_lea.vmem %s0, %s211
        $region40: #{tpu_custom_call.1} parent=35 // pred_fallthru
          _
      $region36: #{tpu_custom_call.1} parent=5 // pred_fallthru
        _
      %p213 = scmp.le.s32.totalorder 1, %s15
      %p214 = scmp.lt.s32.totalorder %s15, 3
      %p215 = pnand %p213, %p214
      %p216 = pneg %p215
      // Predicated region
      $region41: #{tpu_custom_call.1} parent=5 // pred_check
        _
      $region42: #{tpu_custom_call.1} parent=5 // pred_check_branch
        %218 = sbr.rel (%p215) target = $region44
      $region43: #{tpu_custom_call.1} parent=5 // pred_region
        %s219 = ssub.s32 %s15, 1
        %p220 = scmp.lt.s32.totalorder %s20, 1
        %s221 = scalar_select %p220, %s20, 1
        %s222 = smul.addr %s221, 8
        %s223 = scalar_lea.vmem %s0, %s222
        %p224 = pneg %p41
        %p225 = pneg %p38
        %p226 = pneg %p62
        %p227 = pneg %p59
        %p228 = pneg %p83
        %p229 = pneg %p80
        %p230 = pneg %p104
        %p231 = pneg %p101
        %p232 = pneg %p125
        %p233 = pneg %p122
        %p234 = pneg %p146
        %p235 = pneg %p143
        %p236 = pneg %p172
        %p237 = pneg %p169
        %s238 = sand.u32 %s159, 1
        %s239 = scalar_lea.sflag [#allocation3], %s238
        %s240 = sand.u32 %s159, 1
        %s241 = smul.addr %s240, 16
        %s242 = scalar_lea.vmem [#allocation2], %s241
        %p243 = scmp.lt.s32.totalorder %s20, 1
        %s244 = scalar_select %p243, %s20, 1
        %s245 = smul.addr %s244, 8
        %s246 = scalar_lea.vmem %s0, %s245
        %v247 = vld [vmem:[%s246] sm:$0xff]
        %v248 = vld [vmem:[%s1] sm:$0xff]
        %v249 = vld [vmem:[%s1 + $0x8] sm:$0xff]
        %s250 = scalar_lea.vmem %s1, 16
        %v251 = vld [vmem:[%s250] sm:$0xff]
        %v252 = vld [vmem:[%s250 + $0x8] sm:$0xff]
        %254 = vrot.lane.b32.xlu0 %v247, 127
        %v255 = vpop.permute.xlu0 %254
        %vm257 = vcmask 64512
        %v259 = vsel %vm257, %v251, 0
        %v262 = vsel %vm257, %v252, 0
        %264 = vmatprep.subr.mxu0 0.0
        %265 = vmatpush1.msra.mxu0 %v255
        %266 = vmatprep.subr.mxu0 0.0
        %267 = vmatpush1.msra.mxu0 0.0
        %268 = vmatprep.subr.mxu0 0.0
        %269 = vmatpush1.msra.mxu0 0.0
        %270 = vmatprep.subr.mxu0 0.0
        %271 = vmatpush1.msra.mxu0 0.0
        %272 = vmatprep.subr.mxu0 0.0
        %273 = vmatpush1.msra.mxu0 0.0
        %274 = vmatprep.subr.mxu0 0.0
        %275 = vmatpush1.msra.mxu0 0.0
        %276 = vmatprep.subr.mxu0 0.0
        %277 = vmatpush1.msra.mxu0 0.0
        %278 = vmatprep.subr.mxu0 0.0
        %279 = vmatpush1.msra.mxu0 0.0
        %280 = vmatprep.subr.mxu0 0.0
        %281 = vmatpush1.msra.mxu0 0.0
        %282 = vmatprep.subr.mxu0 0.0
        %283 = vmatpush1.msra.mxu0 0.0
        %284 = vmatprep.subr.mxu0 0.0
        %285 = vmatpush1.msra.mxu0 0.0
        %286 = vmatprep.subr.mxu0 0.0
        %287 = vmatpush1.msra.mxu0 0.0
        %288 = vmatprep.subr.mxu0 0.0
        %289 = vmatpush1.msra.mxu0 0.0
        %290 = vmatprep.subr.mxu0 0.0
        %291 = vmatpush1.msra.mxu0 0.0
        %292 = vmatprep.subr.mxu0 0.0
        %293 = vmatpush1.msra.mxu0 0.0
        %294 = vmatprep.subr.mxu0 0.0
        %295 = vmatpush1.msra.mxu0 0.0
        %296 = vmatprep.subr.mxu0 0.0
        %297 = vmatpush1.msra.mxu0 0.0
        %298 = vmatprep.subr.mxu0 0.0
        %299 = vmatpush1.msra.mxu0 0.0
        %300 = vmatprep.subr.mxu0 0.0
        %301 = vmatpush1.msra.mxu0 0.0
        %302 = vmatprep.subr.mxu0 0.0
        %303 = vmatpush1.msra.mxu0 0.0
        %304 = vmatprep.subr.mxu0 0.0
        %305 = vmatpush1.msra.mxu0 0.0
        %306 = vmatprep.subr.mxu0 0.0
        %307 = vmatpush1.msra.mxu0 0.0
        %308 = vmatprep.subr.mxu0 0.0
        %309 = vmatpush1.msra.mxu0 0.0
        %310 = vmatprep.subr.mxu0 0.0
        %311 = vmatpush1.msra.mxu0 0.0
        %312 = vmatprep.subr.mxu0 0.0
        %313 = vmatpush1.msra.mxu0 0.0
        %314 = vmatprep.subr.mxu0 0.0
        %315 = vmatpush1.msra.mxu0 0.0
        %316 = vmatprep.subr.mxu0 0.0
        %317 = vmatpush1.msra.mxu0 0.0
        %318 = vmatprep.subr.mxu0 0.0
        %319 = vmatpush1.msra.mxu0 0.0
        %320 = vmatprep.subr.mxu0 0.0
        %321 = vmatpush1.msra.mxu0 0.0
        %322 = vmatprep.subr.mxu0 0.0
        %323 = vmatpush1.msra.mxu0 0.0
        %324 = vmatprep.subr.mxu0 0.0
        %325 = vmatpush1.msra.mxu0 0.0
        %326 = vmatprep.subr.mxu0 0.0
        %327 = vmatpush1.msra.mxu0 0.0
        %328 = vmatprep.mubr.f32.mxu0 0.0
        %329 = vmatmul.mubr.f32.gmra.mrb[0].mxu0 %v259
        %v330 = vpop.f32.mrb[0].mxu0
        %v331 = vadd.f32 0.0, %v330
        %v332 = vpop.f32.mrb[0].mxu0
        %333 = vmatprep.mubr.f32.mxu0 0.0
        %334 = vmatmul.mubr.f32.gmra.mrb[0].mxu0 %v262
        %v335 = vpop.f32.mrb[0].mxu0
        %v336 = vadd.f32 0.0, %v335
        %v337 = vpop.f32.mrb[0].mxu0
        %338 = vdwg.mxu0
        %v340 = vsel %vm257, %v248, 0
        %v343 = vsel %vm257, %v249, 0
        %345 = vmatprep.subr.mxu0 0.0
        %346 = vmatpush1.msra.mxu0 %v247
        %347 = vmatprep.subr.mxu0 0.0
        %348 = vmatpush1.msra.mxu0 0.0
        %349 = vmatprep.subr.mxu0 0.0
        %350 = vmatpush1.msra.mxu0 0.0
        %351 = vmatprep.subr.mxu0 0.0
        %352 = vmatpush1.msra.mxu0 0.0
        %353 = vmatprep.subr.mxu0 0.0
        %354 = vmatpush1.msra.mxu0 0.0
        %355 = vmatprep.subr.mxu0 0.0
        %356 = vmatpush1.msra.mxu0 0.0
        %357 = vmatprep.subr.mxu0 0.0
        %358 = vmatpush1.msra.mxu0 0.0
        %359 = vmatprep.subr.mxu0 0.0
        %360 = vmatpush1.msra.mxu0 0.0
        %361 = vmatprep.subr.mxu0 0.0
        %362 = vmatpush1.msra.mxu0 0.0
        %363 = vmatprep.subr.mxu0 0.0
        %364 = vmatpush1.msra.mxu0 0.0
        %365 = vmatprep.subr.mxu0 0.0
        %366 = vmatpush1.msra.mxu0 0.0
        %367 = vmatprep.subr.mxu0 0.0
        %368 = vmatpush1.msra.mxu0 0.0
        %369 = vmatprep.subr.mxu0 0.0
        %370 = vmatpush1.msra.mxu0 0.0
        %371 = vmatprep.subr.mxu0 0.0
        %372 = vmatpush1.msra.mxu0 0.0
        %373 = vmatprep.subr.mxu0 0.0
        %374 = vmatpush1.msra.mxu0 0.0
        %375 = vmatprep.subr.mxu0 0.0
        %376 = vmatpush1.msra.mxu0 0.0
        %377 = vmatprep.subr.mxu0 0.0
        %378 = vmatpush1.msra.mxu0 0.0
        %379 = vmatprep.subr.mxu0 0.0
        %380 = vmatpush1.msra.mxu0 0.0
        %381 = vmatprep.subr.mxu0 0.0
        %382 = vmatpush1.msra.mxu0 0.0
        %383 = vmatprep.subr.mxu0 0.0
        %384 = vmatpush1.msra.mxu0 0.0
        %385 = vmatprep.subr.mxu0 0.0
        %386 = vmatpush1.msra.mxu0 0.0
        %387 = vmatprep.subr.mxu0 0.0
        %388 = vmatpush1.msra.mxu0 0.0
        %389 = vmatprep.subr.mxu0 0.0
        %390 = vmatpush1.msra.mxu0 0.0
        %391 = vmatprep.subr.mxu0 0.0
        %392 = vmatpush1.msra.mxu0 0.0
        %393 = vmatprep.subr.mxu0 0.0
        %394 = vmatpush1.msra.mxu0 0.0
        %395 = vmatprep.subr.mxu0 0.0
        %396 = vmatpush1.msra.mxu0 0.0
        %397 = vmatprep.subr.mxu0 0.0
        %398 = vmatpush1.msra.mxu0 0.0
        %399 = vmatprep.subr.mxu0 0.0
        %400 = vmatpush1.msra.mxu0 0.0
        %401 = vmatprep.subr.mxu0 0.0
        %402 = vmatpush1.msra.mxu0 0.0
        %403 = vmatprep.subr.mxu0 0.0
        %404 = vmatpush1.msra.mxu0 0.0
        %405 = vmatprep.subr.mxu0 0.0
        %406 = vmatpush1.msra.mxu0 0.0
        %407 = vmatprep.subr.mxu0 0.0
        %408 = vmatpush1.msra.mxu0 0.0
        %409 = vmatprep.mubr.f32.mxu0 0.0
        %410 = vmatmul.mubr.f32.gmra.mrb[0].mxu0 %v340
        %v411 = vpop.f32.mrb[0].mxu0
        %v412 = vadd.f32 %v331, %v411
        %v413 = vpop.f32.mrb[0].mxu0
        %414 = vmatprep.mubr.f32.mxu0 0.0
        %415 = vmatmul.mubr.f32.gmra.mrb[0].mxu0 %v343
        %v416 = vpop.f32.mrb[0].mxu0
        %v417 = vadd.f32 %v336, %v416
        %v418 = vpop.f32.mrb[0].mxu0
        %419 = vdwg.mxu0
        %s420 = scalar_lea.vmem %s1, 32
        %v421 = vld [vmem:[%s420] sm:$0xff]
        %v422 = vld [vmem:[%s420 + $0x8] sm:$0xff]
        %423 = vrot.lane.b32.xlu0 %v247, 126
        %v424 = vpop.permute.xlu0 %423
        %v427 = vsel %vm257, %v421, 0
        %v430 = vsel %vm257, %v422, 0
        %432 = vmatprep.subr.mxu0 0.0
        %433 = vmatpush1.msra.mxu0 %v424
        %434 = vmatprep.subr.mxu0 0.0
        %435 = vmatpush1.msra.mxu0 0.0
        %436 = vmatprep.subr.mxu0 0.0
        %437 = vmatpush1.msra.mxu0 0.0
        %438 = vmatprep.subr.mxu0 0.0
        %439 = vmatpush1.msra.mxu0 0.0
        %440 = vmatprep.subr.mxu0 0.0
        %441 = vmatpush1.msra.mxu0 0.0
        %442 = vmatprep.subr.mxu0 0.0
        %443 = vmatpush1.msra.mxu0 0.0
        %444 = vmatprep.subr.mxu0 0.0
        %445 = vmatpush1.msra.mxu0 0.0
        %446 = vmatprep.subr.mxu0 0.0
        %447 = vmatpush1.msra.mxu0 0.0
        %448 = vmatprep.subr.mxu0 0.0
        %449 = vmatpush1.msra.mxu0 0.0
        %450 = vmatprep.subr.mxu0 0.0
        %451 = vmatpush1.msra.mxu0 0.0
        %452 = vmatprep.subr.mxu0 0.0
        %453 = vmatpush1.msra.mxu0 0.0
        %454 = vmatprep.subr.mxu0 0.0
        %455 = vmatpush1.msra.mxu0 0.0
        %456 = vmatprep.subr.mxu0 0.0
        %457 = vmatpush1.msra.mxu0 0.0
        %458 = vmatprep.subr.mxu0 0.0
        %459 = vmatpush1.msra.mxu0 0.0
        %460 = vmatprep.subr.mxu0 0.0
        %461 = vmatpush1.msra.mxu0 0.0
        %462 = vmatprep.subr.mxu0 0.0
        %463 = vmatpush1.msra.mxu0 0.0
        %464 = vmatprep.subr.mxu0 0.0
        %465 = vmatpush1.msra.mxu0 0.0
        %466 = vmatprep.subr.mxu0 0.0
        %467 = vmatpush1.msra.mxu0 0.0
        %468 = vmatprep.subr.mxu0 0.0
        %469 = vmatpush1.msra.mxu0 0.0
        %470 = vmatprep.subr.mxu0 0.0
        %471 = vmatpush1.msra.mxu0 0.0
        %472 = vmatprep.subr.mxu0 0.0
        %473 = vmatpush1.msra.mxu0 0.0
        %474 = vmatprep.subr.mxu0 0.0
        %475 = vmatpush1.msra.mxu0 0.0
        %476 = vmatprep.subr.mxu0 0.0
        %477 = vmatpush1.msra.mxu0 0.0
        %478 = vmatprep.subr.mxu0 0.0
        %479 = vmatpush1.msra.mxu0 0.0
        %480 = vmatprep.subr.mxu0 0.0
        %481 = vmatpush1.msra.mxu0 0.0
        %482 = vmatprep.subr.mxu0 0.0
        %483 = vmatpush1.msra.mxu0 0.0
        %484 = vmatprep.subr.mxu0 0.0
        %485 = vmatpush1.msra.mxu0 0.0
        %486 = vmatprep.subr.mxu0 0.0
        %487 = vmatpush1.msra.mxu0 0.0
        %488 = vmatprep.subr.mxu0 0.0
        %489 = vmatpush1.msra.mxu0 0.0
        %490 = vmatprep.subr.mxu0 0.0
        %491 = vmatpush1.msra.mxu0 0.0
        %492 = vmatprep.subr.mxu0 0.0
        %493 = vmatpush1.msra.mxu0 0.0
        %494 = vmatprep.subr.mxu0 0.0
        %495 = vmatpush1.msra.mxu0 0.0
        %496 = vmatprep.mubr.f32.mxu0 0.0
        %497 = vmatmul.mubr.f32.gmra.mrb[0].mxu0 %v427
        %v498 = vpop.f32.mrb[0].mxu0
        %v499 = vadd.f32 0.0, %v498
        %v500 = vpop.f32.mrb[0].mxu0
        %501 = vmatprep.mubr.f32.mxu0 0.0
        %502 = vmatmul.mubr.f32.gmra.mrb[0].mxu0 %v430
        %v503 = vpop.f32.mrb[0].mxu0
        %v504 = vadd.f32 0.0, %v503
        %v505 = vpop.f32.mrb[0].mxu0
        %506 = vdwg.mxu0
        %v507 = vadd.f32 %v412, %v499
        %v508 = vadd.f32 %v417, %v504
        %v509 = vld [vmem:[%s2] sm:$0xff]
        %v510 = vld [vmem:[%s2 + $0x8] sm:$0xff]
        %512 = vset.pattern.permute.xlu0 0
        %513 = vperm.xlu0 %512, %v509
        %v514 = vpop.permute.xlu0 %513
        %517 = vset.pattern.permute.xlu0 0
        %518 = vperm.xlu0 %517, %v510
        %v519 = vpop.permute.xlu0 %518
        %v521 = vadd.f32 %v507, %v514
        %v522 = vadd.f32 %v508, %v519
        %vm523 = vcmask 130048
        %v524 = vsel %vm523, %v521, 0.0
        %525 = vadd.xlane.f32.xlu0 %v524
        %v526 = vpop.xlane.xlu0 %525
        %v527 = vsel %vm523, %v522, 0.0
        %528 = vadd.xlane.f32.xlu0 %v527
        %v529 = vpop.xlane.xlu0 %528
        %v530 = vmul.f32 %v521, %v521
        %v531 = vmul.f32 %v522, %v522
        %v532 = vsel %vm523, %v530, 0.0
        %533 = vadd.xlane.f32.xlu0 %v532
        %v534 = vpop.xlane.xlu0 %533
        %v535 = vsel %vm523, %v531, 0.0
        %536 = vadd.xlane.f32.xlu0 %v535
        %v537 = vpop.xlane.xlu0 %536
        %v538 = vld [vmem:[%s3] sm:$0xff]
        %v539 = vld [vmem:[%s3 + $0x8] sm:$0xff]
        %v541 = vsel %vm523, %v538, 0
        %v544 = vsel %vm523, %v539, 0
        %546 = vmatprep.subr.mxu0 0.0
        %547 = vmatpush1.msra.mxu0 %v526
        %548 = vmatprep.subr.mxu0 0.0
        %549 = vmatpush1.msra.mxu0 %v529
        %550 = vmatprep.subr.mxu0 0.0
        %551 = vmatpush1.msra.mxu0 0.0
        %552 = vmatprep.subr.mxu0 0.0
        %553 = vmatpush1.msra.mxu0 0.0
        %554 = vmatprep.subr.mxu0 0.0
        %555 = vmatpush1.msra.mxu0 0.0
        %556 = vmatprep.subr.mxu0 0.0
        %557 = vmatpush1.msra.mxu0 0.0
        %558 = vmatprep.subr.mxu0 0.0
        %559 = vmatpush1.msra.mxu0 0.0
        %560 = vmatprep.subr.mxu0 0.0
        %561 = vmatpush1.msra.mxu0 0.0
        %562 = vmatprep.subr.mxu0 0.0
        %563 = vmatpush1.msra.mxu0 0.0
        %564 = vmatprep.subr.mxu0 0.0
        %565 = vmatpush1.msra.mxu0 0.0
        %566 = vmatprep.subr.mxu0 0.0
        %567 = vmatpush1.msra.mxu0 0.0
        %568 = vmatprep.subr.mxu0 0.0
        %569 = vmatpush1.msra.mxu0 0.0
        %570 = vmatprep.subr.mxu0 0.0
        %571 = vmatpush1.msra.mxu0 0.0
        %572 = vmatprep.subr.mxu0 0.0
        %573 = vmatpush1.msra.mxu0 0.0
        %574 = vmatprep.subr.mxu0 0.0
        %575 = vmatpush1.msra.mxu0 0.0
        %576 = vmatprep.subr.mxu0 0.0
        %577 = vmatpush1.msra.mxu0 0.0
        %578 = vmatprep.subr.mxu0 0.0
        %579 = vmatpush1.msra.mxu0 0.0
        %580 = vmatprep.subr.mxu0 0.0
        %581 = vmatpush1.msra.mxu0 0.0
        %582 = vmatprep.subr.mxu0 0.0
        %583 = vmatpush1.msra.mxu0 0.0
        %584 = vmatprep.subr.mxu0 0.0
        %585 = vmatpush1.msra.mxu0 0.0
        %586 = vmatprep.subr.mxu0 0.0
        %587 = vmatpush1.msra.mxu0 0.0
        %588 = vmatprep.subr.mxu0 0.0
        %589 = vmatpush1.msra.mxu0 0.0
        %590 = vmatprep.subr.mxu0 0.0
        %591 = vmatpush1.msra.mxu0 0.0
        %592 = vmatprep.subr.mxu0 0.0
        %593 = vmatpush1.msra.mxu0 0.0
        %594 = vmatprep.subr.mxu0 0.0
        %595 = vmatpush1.msra.mxu0 0.0
        %596 = vmatprep.subr.mxu0 0.0
        %597 = vmatpush1.msra.mxu0 0.0
        %598 = vmatprep.subr.mxu0 0.0
        %599 = vmatpush1.msra.mxu0 0.0
        %600 = vmatprep.subr.mxu0 0.0
        %601 = vmatpush1.msra.mxu0 0.0
        %602 = vmatprep.subr.mxu0 0.0
        %603 = vmatpush1.msra.mxu0 0.0
        %604 = vmatprep.subr.mxu0 0.0
        %605 = vmatpush1.msra.mxu0 0.0
        %606 = vmatprep.subr.mxu0 0.0
        %607 = vmatpush1.msra.mxu0 0.0
        %608 = vmatprep.subr.mxu0 0.0
        %609 = vmatpush1.msra.mxu0 0.0
        %610 = vmatprep.mubr.f32.mxu0 0.0
        %611 = vmatmul.mubr.f32.gmra.mrb[0].mxu0 %v541
        %v612 = vpop.f32.mrb[0].mxu0
        %v613 = vadd.f32 0.0, %v612
        %v614 = vpop.f32.mrb[0].mxu0
        %615 = vmatprep.mubr.f32.mxu0 0.0
        %616 = vmatmul.mubr.f32.gmra.mrb[0].mxu0 %v544
        %v617 = vpop.f32.mrb[0].mxu0
        %v618 = vadd.f32 0.0, %v617
        %v619 = vpop.f32.mrb[0].mxu0
        %620 = vdwg.mxu0
        %621 = vmatprep.subr.mxu0 0.0
        %622 = vmatpush1.msra.mxu0 %v534
        %623 = vmatprep.subr.mxu0 0.0
        %624 = vmatpush1.msra.mxu0 %v537
        %625 = vmatprep.subr.mxu0 0.0
        %626 = vmatpush1.msra.mxu0 0.0
        %627 = vmatprep.subr.mxu0 0.0
        %628 = vmatpush1.msra.mxu0 0.0
        %629 = vmatprep.subr.mxu0 0.0
        %630 = vmatpush1.msra.mxu0 0.0
        %631 = vmatprep.subr.mxu0 0.0
        %632 = vmatpush1.msra.mxu0 0.0
        %633 = vmatprep.subr.mxu0 0.0
        %634 = vmatpush1.msra.mxu0 0.0
        %635 = vmatprep.subr.mxu0 0.0
        %636 = vmatpush1.msra.mxu0 0.0
        %637 = vmatprep.subr.mxu0 0.0
        %638 = vmatpush1.msra.mxu0 0.0
        %639 = vmatprep.subr.mxu0 0.0
        %640 = vmatpush1.msra.mxu0 0.0
        %641 = vmatprep.subr.mxu0 0.0
        %642 = vmatpush1.msra.mxu0 0.0
        %643 = vmatprep.subr.mxu0 0.0
        %644 = vmatpush1.msra.mxu0 0.0
        %645 = vmatprep.subr.mxu0 0.0
        %646 = vmatpush1.msra.mxu0 0.0
        %647 = vmatprep.subr.mxu0 0.0
        %648 = vmatpush1.msra.mxu0 0.0
        %649 = vmatprep.subr.mxu0 0.0
        %650 = vmatpush1.msra.mxu0 0.0
        %651 = vmatprep.subr.mxu0 0.0
        %652 = vmatpush1.msra.mxu0 0.0
        %653 = vmatprep.subr.mxu0 0.0
        %654 = vmatpush1.msra.mxu0 0.0
        %655 = vmatprep.subr.mxu0 0.0
        %656 = vmatpush1.msra.mxu0 0.0
        %657 = vmatprep.subr.mxu0 0.0
        %658 = vmatpush1.msra.mxu0 0.0
        %659 = vmatprep.subr.mxu0 0.0
        %660 = vmatpush1.msra.mxu0 0.0
        %661 = vmatprep.subr.mxu0 0.0
        %662 = vmatpush1.msra.mxu0 0.0
        %663 = vmatprep.subr.mxu0 0.0
        %664 = vmatpush1.msra.mxu0 0.0
        %665 = vmatprep.subr.mxu0 0.0
        %666 = vmatpush1.msra.mxu0 0.0
        %667 = vmatprep.subr.mxu0 0.0
        %668 = vmatpush1.msra.mxu0 0.0
        %669 = vmatprep.subr.mxu0 0.0
        %670 = vmatpush1.msra.mxu0 0.0
        %671 = vmatprep.subr.mxu0 0.0
        %672 = vmatpush1.msra.mxu0 0.0
        %673 = vmatprep.subr.mxu0 0.0
        %674 = vmatpush1.msra.mxu0 0.0
        %675 = vmatprep.subr.mxu0 0.0
        %676 = vmatpush1.msra.mxu0 0.0
        %677 = vmatprep.subr.mxu0 0.0
        %678 = vmatpush1.msra.mxu0 0.0
        %679 = vmatprep.subr.mxu0 0.0
        %680 = vmatpush1.msra.mxu0 0.0
        %681 = vmatprep.subr.mxu0 0.0
        %682 = vmatpush1.msra.mxu0 0.0
        %683 = vmatprep.subr.mxu0 0.0
        %684 = vmatpush1.msra.mxu0 0.0
        %685 = vmatprep.mubr.f32.mxu0 0.0
        %686 = vmatmul.mubr.f32.gmra.mrb[0].mxu0 %v541
        %v687 = vpop.f32.mrb[0].mxu0
        %v688 = vadd.f32 0.0, %v687
        %v689 = vpop.f32.mrb[0].mxu0
        %690 = vmatprep.mubr.f32.mxu0 0.0
        %691 = vmatmul.mubr.f32.gmra.mrb[0].mxu0 %v544
        %v692 = vpop.f32.mrb[0].mxu0
        %v693 = vadd.f32 0.0, %v692
        %v694 = vpop.f32.mrb[0].mxu0
        %695 = vdwg.mxu0
        %v696 = vmul.f32 %v613, %v613
        %v697 = vmul.f32 %v618, %v618
        %v698 = vsub.f32 %v688, %v696
        %v699 = vsub.f32 %v693, %v697
        %v700 = vadd.f32 %v698, 1e-05
        %v701 = vadd.f32 %v699, 1e-05
        %v702 = vrsqrt.pop %v700
        %v703 = vrsqrt.pop %v701
        %705 = vset.pattern.permute.xlu0 0
        %706 = vperm.xlu0 %705, %v613
        %v707 = vpop.permute.xlu0 %706
        %710 = vset.pattern.permute.xlu0 0
        %711 = vperm.xlu0 %710, %v618
        %v712 = vpop.permute.xlu0 %711
        %v714 = vsub.f32 %v521, %v707
        %v715 = vsub.f32 %v522, %v712
        %717 = vset.pattern.permute.xlu0 0
        %718 = vperm.xlu0 %717, %v702
        %v719 = vpop.permute.xlu0 %718
        %722 = vset.pattern.permute.xlu0 0
        %723 = vperm.xlu0 %722, %v703
        %v724 = vpop.permute.xlu0 %723
        %v726 = vmul.f32 %v714, %v719
        %v727 = vmul.f32 %v715, %v724
        %v728 = vld [vmem:[%s4] sm:$0xff]
        %v729 = vld [vmem:[%s4 + $0x8] sm:$0xff]
        %731 = vset.pattern.permute.xlu0 0
        %732 = vperm.xlu0 %731, %v728
        %v733 = vpop.permute.xlu0 %732
        %736 = vset.pattern.permute.xlu0 0
        %737 = vperm.xlu0 %736, %v729
        %v738 = vpop.permute.xlu0 %737
        %v740 = vmul.f32 %v726, %v733
        %v741 = vmul.f32 %v727, %v738
        %v742 = vld [vmem:[%s5] sm:$0xff]
        %v743 = vld [vmem:[%s5 + $0x8] sm:$0xff]
        %745 = vset.pattern.permute.xlu0 0
        %746 = vperm.xlu0 %745, %v742
        %v747 = vpop.permute.xlu0 %746
        %750 = vset.pattern.permute.xlu0 0
        %751 = vperm.xlu0 %750, %v743
        %v752 = vpop.permute.xlu0 %751
        %v754 = vadd.f32 %v740, %v747
        %v755 = vadd.f32 %v741, %v752
        %v756 = vmax.f32 %v754, 0.0
        %v757 = vmax.f32 %v755, 0.0
        %v758 = vand.u32 2147483647, %v754
        %v759 = vand.u32 2147483647, %v755
        %v760 = vsub.f32 0.0, %v758
        %v761 = vsub.f32 0.0, %v759
        %v762 = vmul.f32 %v760, 1.442695
        %v763 = vpow.pop %v762
        %v764 = vmul.f32 %v761, 1.442695
        %v765 = vpow.pop %v764
        %v766 = vadd.f32 %v763, 1.0
        %v767 = vadd.f32 %v765, 1.0
        %v768 = vlog2.pop %v766
        %v769 = vmul.f32 %v768, 0.6931472
        %v770 = vlog2.pop %v767
        %v771 = vmul.f32 %v770, 0.6931472
        %v772 = vadd.f32 %v756, %v769
        %v773 = vadd.f32 %v757, %v771
        %v774 = vtanh.pop %v772
        %v775 = vtanh.pop %v773
        %v776 = vmul.f32 %v754, %v774
        %v777 = vmul.f32 %v755, %v775
        %778 = vst.msk [vmem:[%s242] sm:$0xff] %vm523, %v776
        %779 = vst.msk [vmem:[%s242 + $0x8] sm:$0xff] %vm523, %v777
        %s780 = sand.u32 %s159, 1
        %s781 = scalar_lea.sflag [#allocation3], %s780
        %s782 = sand.u32 %s159, 1
        %s783 = smul.addr %s782, 16
        %s784 = scalar_lea.vmem [#allocation2], %s783
        // Predicated region
        $region45: #{tpu_custom_call.1} parent=43 // pred_check
          %p785 = pneg %p169
        $region46: #{tpu_custom_call.1} parent=43 // pred_check_branch
          %787 = sbr.rel (%p785) target = $region48
        $region47: #{tpu_custom_call.1} parent=43 // pred_region
          %s789 = ssub.s32 256, 256
          %790 = vsyncadd %s781, %s789
          %s791 = smul.addr %s20, 2
          %s792 = smul.addr %s791, 128
          %s793 = scalar_lea.hbm %s6, %s792
          %s794 = sshll.u32 %s784, 4
          %s795 = int_to_ptr.vmem [resolvable:$true] %s794
          %800 = dma.vmem_to_hbm [thread:$0]  %s795, 256, %s793, %s781, 128, 128, 8
        $region48: #{tpu_custom_call.1} parent=43 // pred_fallthru
          _
      $region44: #{tpu_custom_call.1} parent=5 // pred_fallthru
        _
      %p801 = scmp.le.s32.totalorder 2, %s15
      // Predicated region
      $region49: #{tpu_custom_call.1} parent=5 // pred_check
        %p802 = pneg %p801
      $region50: #{tpu_custom_call.1} parent=5 // pred_check_branch
        %804 = sbr.rel (%p802) target = $region52
      $region51: #{tpu_custom_call.1} parent=5 // pred_region
        %s805 = ssub.s32 %s15, 2
        // Predicated region
        $region53: #{tpu_custom_call.1} parent=51 // pred_check
          %p806 = pneg %p175
        $region54: #{tpu_custom_call.1} parent=51 // pred_check_branch
          %808 = sbr.rel (%p806) target = $region56
        $region55: #{tpu_custom_call.1} parent=51 // pred_region
          %s809 = sand.u32 %s160, 1
          %s810 = scalar_lea.sflag [#allocation3], %s809
          %s811 = sand.u32 %s160, 1
          %s812 = smul.addr %s811, 16
          %s813 = scalar_lea.vmem [#allocation2], %s812
          %814 = dma.done %s810, 256
        $region56: #{tpu_custom_call.1} parent=51 // pred_fallthru
          _
      $region52: #{tpu_custom_call.1} parent=5 // pred_fallthru
        _
    $region6: #{tpu_custom_call.1} parent=1 // loop_footer
      %s19 = sadd.s32 1, %s15
    $region7: #{tpu_custom_call.1} parent=1 // loop_footer_branch
      %14 = sbr.rel target = $region3
    $region8: #{tpu_custom_call.1} parent=1 // loop_exit
      _
    %815 = vsyncpa [#allocation3], 1
    %s816 = scalar_lea.sflag [#allocation3], 1
    %817 = vsyncpa %s816, 1

</llo_original>
